<compile_context>
chip_gen: v7x
topology: tpu7x:2x2x1
jax: 0.10.0
libtpu: 0.0.40
codegen_flags: <defaults>
</compile_context>

<pallas_src>
import functools

import jax
import jax.numpy as jnp
from jax import lax
from jax.experimental import pallas as pl
from jax.experimental.pallas import tpu as pltpu


def _cln_kernel(real_ref, imag_ref, params_ref, out_r_ref, out_i_ref, *, eps):
    """Fused coupled complex LayerNorm for one (tm, D) row-tile.

    params_ref is an (8, D) f32 block:
      row 0: gamma_real   row 1: beta_real
      row 2: gamma_imag   row 3: beta_imag
      row 4: sigmoid(coupling) * cross_gain_ri
      row 5: sigmoid(coupling) * cross_gain_ir
      rows 6-7: zero padding (sublane alignment)
    """
    r = real_ref[...].astype(jnp.float32)           # (tm, D)
    im = imag_ref[...].astype(jnp.float32)          # (tm, D)
    p = params_ref[...]                             # (8, D) f32, resident

    g_r, b_r = p[0:1, :], p[1:2, :]
    g_i, b_i = p[2:3, :], p[3:4, :]
    eff_ri, eff_ir = p[4:5, :], p[5:6, :]

    def _ln(x, gamma, beta):
        mu = jnp.mean(x, axis=-1, keepdims=True)
        xc = x - mu
        var = jnp.mean(xc * xc, axis=-1, keepdims=True)   # biased var (torch LayerNorm)
        inv = lax.rsqrt(var + eps)
        return xc * inv * gamma + beta

    real_normed = _ln(r, g_r, b_r)
    imag_normed = _ln(im, g_i, b_i)

    out_r_ref[...] = (real_normed + eff_ri * imag_normed).astype(out_r_ref.dtype)
    out_i_ref[...] = (imag_normed + eff_ir * real_normed).astype(out_i_ref.dtype)


def _round_up(x, m):
    return ((x + m - 1) // m) * m


def _pick_tm(tm, m_rows, d, itemsize, sub):
    """Large row tiles, bounded by a VMEM budget and the actual row count."""
    tm = max(sub, tm)
    # Per grid step: 2 inputs + 2 outputs, each double-buffered by the pipeline,
    # plus ~4 f32 working copies of the tile inside the kernel body.
    per_row_bytes = (2 * 4 * d * max(itemsize, 1)) + (4 * d * 4)
    budget = 20 << 20                         # conservative; vmem_limit set to 32 MiB
    cap = max(sub, (budget // per_row_bytes) // sub * sub)
    tm = min(tm, cap)
    tm = min(tm, _round_up(m_rows, sub))      # don't over-pad tiny inputs
    return _round_up(tm, sub)


def complex_layer_norm(real, imag,
                       gamma_r, beta_r, gamma_i, beta_i,
                       coupling, cross_gain_ri, cross_gain_ir,
                       *, eps=1e-5, coupled=True, tm=1024):
    """Pallas implementation of ComplexLayerNorm.forward.

    real, imag:            [..., dim]
    gamma_*, beta_*:       [dim]   (nn.LayerNorm affine params)
    coupling:              scalar  (raw parameter; sigmoid applied here)
    cross_gain_ri/ir:      [dim]
    Returns (real_out, imag_out), same shape/dtype as the inputs.
    """
    orig_shape = real.shape
    D = orig_shape[-1]
    r2 = real.reshape(-1, D)
    i2 = imag.reshape(-1, D)
    M = r2.shape[0]

    itemsize = jnp.dtype(real.dtype).itemsize
    sub = 8 * max(1, 4 // max(1, itemsize))   # sublane granularity: f32->8, bf16->16
    tm = _pick_tm(tm, M, D, itemsize, sub)
    n_tiles = pl.cdiv(M, tm)

    f32 = jnp.float32
    if coupled:
        cs = jax.nn.sigmoid(jnp.asarray(coupling, f32))
        eff_ri = cs * cross_gain_ri.astype(f32)
        eff_ir = cs * cross_gain_ir.astype(f32)
    else:
        eff_ri = jnp.zeros((D,), f32)
        eff_ir = jnp.zeros((D,), f32)

    zeros = jnp.zeros((D,), f32)
    params = jnp.stack(
        [gamma_r.astype(f32), beta_r.astype(f32),
         gamma_i.astype(f32), beta_i.astype(f32),
         eff_ri, eff_ir, zeros, zeros],
        axis=0)                                # (8, D), single resident param block

    row_spec = pl.BlockSpec((tm, D), lambda i: (i, 0))
    par_spec = pl.BlockSpec((8, D), lambda i: (0, 0))   # constant index -> resident

    out_r, out_i = pl.pallas_call(
        functools.partial(_cln_kernel, eps=float(eps)),
        out_shape=(
            jax.ShapeDtypeStruct((M, D), real.dtype),
            jax.ShapeDtypeStruct((M, D), imag.dtype),
        ),
        grid_spec=pltpu.PrefetchScalarGridSpec(
            num_scalar_prefetch=0,
            grid=(n_tiles,),
            in_specs=[
                row_spec,   # real tile
                row_spec,   # imag tile
                par_spec,   # packed parameters
            ],
            out_specs=[
                pl.BlockSpec((tm, D), lambda i: (i, 0)),
                pl.BlockSpec((tm, D), lambda i: (i, 0)),
            ],
        ),
        compiler_params=pltpu.CompilerParams(
            dimension_semantics=("parallel",),
            vmem_limit_bytes=32 << 20,
        ),
    )(r2, i2, params)

    return out_r.reshape(orig_shape), out_i.reshape(orig_shape)


# ----------------------------------------------------------------------------
# Pure-JAX reference (mirrors the PyTorch module exactly) for verification.
# ----------------------------------------------------------------------------
def _ref_layer_norm(x, gamma, beta, eps):
    mu = x.mean(axis=-1, keepdims=True)
    var = ((x - mu) ** 2).mean(axis=-1, keepdims=True)
    return (x - mu) / jnp.sqrt(var + eps) * gamma + beta


def _ref_complex_layer_norm(real, imag, gamma_r, beta_r, gamma_i, beta_i,
                            coupling, cross_gain_ri, cross_gain_ir,
                            eps=1e-5, coupled=True):
    rn = _ref_layer_norm(real, gamma_r, beta_r, eps)
    im = _ref_layer_norm(imag, gamma_i, beta_i, eps)
    if coupled:
        cs = jax.nn.sigmoid(coupling)
        return rn + cs * cross_gain_ri * im, im + cs * cross_gain_ir * rn
    return rn, im


if __name__ == "__main__":
    batch, seq, dim = 2, 8, 32
    eps = 1e-5

    key = jax.random.PRNGKey(0)
    kr, ki, kg1, kb1, kg2, kb2, kcr, kci = jax.random.split(key, 8)

    real = jax.random.normal(kr, (batch, seq, dim), dtype=jnp.float32)
    imag = jax.random.normal(ki, (batch, seq, dim), dtype=jnp.float32)

    # Non-trivial parameters so the cross-coupling path is actually exercised.
    gamma_r = 1.0 + 0.1 * jax.random.normal(kg1, (dim,), dtype=jnp.float32)
    beta_r = 0.1 * jax.random.normal(kb1, (dim,), dtype=jnp.float32)
    gamma_i = 1.0 + 0.1 * jax.random.normal(kg2, (dim,), dtype=jnp.float32)
    beta_i = 0.1 * jax.random.normal(kb2, (dim,), dtype=jnp.float32)
    coupling = jnp.asarray(0.1, dtype=jnp.float32)           # module init value
    cross_gain_ri = 0.05 * jax.random.normal(kcr, (dim,), dtype=jnp.float32)
    cross_gain_ir = 0.05 * jax.random.normal(kci, (dim,), dtype=jnp.float32)

    out_r, out_i = complex_layer_norm(
        real, imag, gamma_r, beta_r, gamma_i, beta_i,
        coupling, cross_gain_ri, cross_gain_ir, eps=eps, coupled=True)
    jax.block_until_ready((out_r, out_i))

    ref_r, ref_i = _ref_complex_layer_norm(
        real, imag, gamma_r, beta_r, gamma_i, beta_i,
        coupling, cross_gain_ri, cross_gain_ir, eps=eps, coupled=True)

    assert out_r.shape == (batch, seq, dim) and out_i.shape == (batch, seq, dim)
    assert jnp.allclose(out_r, ref_r, atol=1e-5, rtol=1e-5)
    assert jnp.allclose(out_i, ref_i, atol=1e-5, rtol=1e-5)

    # Exercise the partial-boundary-block path (M not a multiple of the row tile /
    # sublane granularity) and the uncoupled branch.
    real2 = jax.random.normal(kr, (3, 5, dim), dtype=jnp.float32)
    imag2 = jax.random.normal(ki, (3, 5, dim), dtype=jnp.float32)
    out_r2, out_i2 = complex_layer_norm(
        real2, imag2, gamma_r, beta_r, gamma_i, beta_i,
        coupling, cross_gain_ri, cross_gain_ir, eps=eps, coupled=False)
    jax.block_until_ready((out_r2, out_i2))
    ref_r2, ref_i2 = _ref_complex_layer_norm(
        real2, imag2, gamma_r, beta_r, gamma_i, beta_i,
        coupling, cross_gain_ri, cross_gain_ir, eps=eps, coupled=False)
    assert jnp.allclose(out_r2, ref_r2, atol=1e-5, rtol=1e-5)
    assert jnp.allclose(out_i2, ref_i2, atol=1e-5, rtol=1e-5)

    print("KERNEL_OK")
</pallas_src>

<mosaic_0001>
module attributes {stable_mosaic.version = 11 : i64} {
  func.func @_cln_kernel(%arg0: i32, %arg1: memref<16x32xf32, #tpu.memory_space<vmem>>, %arg2: memref<16x32xf32, #tpu.memory_space<vmem>>, %arg3: memref<8x32xf32, #tpu.memory_space<vmem>>, %arg4: memref<16x32xf32, #tpu.memory_space<vmem>>, %arg5: memref<16x32xf32, #tpu.memory_space<vmem>>) attributes {dimension_semantics = [#tpu.dimension_semantics<parallel>], iteration_bounds = array<i64: 1>, scalar_prefetch = 0 : i64, scratch_operands = 0 : i64, tpu.core_type = #tpu.core_type<tc>, window_params = [{transform_indices = @transform_0, window_bounds = array<i64: 16, 32>}, {transform_indices = @transform_1, window_bounds = array<i64: 16, 32>}, {pipeline_mode = #tpu.pipeline_mode<synchronous>, transform_indices = @transform_2, window_bounds = array<i64: 8, 32>}, {transform_indices = @transform_3, window_bounds = array<i64: 16, 32>}, {transform_indices = @transform_4, window_bounds = array<i64: 16, 32>}]} {
    %c0 = arith.constant 0 : index
    %c0_0 = arith.constant 0 : index
    %0 = vector.load %arg1[%c0, %c0_0] : memref<16x32xf32, #tpu.memory_space<vmem>>, vector<16x32xf32>
    %c0_1 = arith.constant 0 : index
    %c0_2 = arith.constant 0 : index
    %1 = vector.load %arg2[%c0_1, %c0_2] : memref<16x32xf32, #tpu.memory_space<vmem>>, vector<16x32xf32>
    %c0_3 = arith.constant 0 : index
    %c0_4 = arith.constant 0 : index
    %2 = vector.load %arg3[%c0_3, %c0_4] : memref<8x32xf32, #tpu.memory_space<vmem>>, vector<8x32xf32>
    %3 = vector.extract_strided_slice %2 {offsets = [0, 0], sizes = [1, 32], strides = [1, 1]} : vector<8x32xf32> to vector<1x32xf32>
    %4 = vector.extract_strided_slice %2 {offsets = [1, 0], sizes = [1, 32], strides = [1, 1]} : vector<8x32xf32> to vector<1x32xf32>
    %5 = vector.extract_strided_slice %2 {offsets = [2, 0], sizes = [1, 32], strides = [1, 1]} : vector<8x32xf32> to vector<1x32xf32>
    %6 = vector.extract_strided_slice %2 {offsets = [3, 0], sizes = [1, 32], strides = [1, 1]} : vector<8x32xf32> to vector<1x32xf32>
    %7 = vector.extract_strided_slice %2 {offsets = [4, 0], sizes = [1, 32], strides = [1, 1]} : vector<8x32xf32> to vector<1x32xf32>
    %8 = vector.extract_strided_slice %2 {offsets = [5, 0], sizes = [1, 32], strides = [1, 1]} : vector<8x32xf32> to vector<1x32xf32>
    %cst = arith.constant dense<0.000000e+00> : vector<16xf32>
    %9 = vector.multi_reduction <add>, %0, %cst [1] : vector<16x32xf32> to vector<16xf32>
    %10 = vector.shape_cast %9 : vector<16xf32> to vector<16x1xf32>
    %cst_5 = arith.constant 3.200000e+01 : f32
    %11 = vector.broadcast %cst_5 : f32 to vector<16x1xf32>
    %12 = arith.divf %10, %11 : vector<16x1xf32>
    %13 = vector.broadcast %12 : vector<16x1xf32> to vector<16x32xf32>
    %14 = arith.subf %0, %13 : vector<16x32xf32>
    %15 = arith.mulf %14, %14 : vector<16x32xf32>
    %cst_6 = arith.constant dense<0.000000e+00> : vector<16xf32>
    %16 = vector.multi_reduction <add>, %15, %cst_6 [1] : vector<16x32xf32> to vector<16xf32>
    %17 = vector.shape_cast %16 : vector<16xf32> to vector<16x1xf32>
    %cst_7 = arith.constant 3.200000e+01 : f32
    %18 = vector.broadcast %cst_7 : f32 to vector<16x1xf32>
    %19 = arith.divf %17, %18 : vector<16x1xf32>
    %cst_8 = arith.constant 9.99999974E-6 : f32
    %20 = vector.broadcast %cst_8 : f32 to vector<16x1xf32>
    %21 = arith.addf %19, %20 : vector<16x1xf32>
    %22 = math.rsqrt %21 : vector<16x1xf32>
    %23 = vector.broadcast %22 : vector<16x1xf32> to vector<16x32xf32>
    %24 = arith.mulf %14, %23 : vector<16x32xf32>
    %25 = vector.broadcast %3 : vector<1x32xf32> to vector<16x32xf32>
    %26 = arith.mulf %24, %25 : vector<16x32xf32>
    %27 = vector.broadcast %4 : vector<1x32xf32> to vector<16x32xf32>
    %28 = arith.addf %26, %27 : vector<16x32xf32>
    %cst_9 = arith.constant dense<0.000000e+00> : vector<16xf32>
    %29 = vector.multi_reduction <add>, %1, %cst_9 [1] : vector<16x32xf32> to vector<16xf32>
    %30 = vector.shape_cast %29 : vector<16xf32> to vector<16x1xf32>
    %cst_10 = arith.constant 3.200000e+01 : f32
    %31 = vector.broadcast %cst_10 : f32 to vector<16x1xf32>
    %32 = arith.divf %30, %31 : vector<16x1xf32>
    %33 = vector.broadcast %32 : vector<16x1xf32> to vector<16x32xf32>
    %34 = arith.subf %1, %33 : vector<16x32xf32>
    %35 = arith.mulf %34, %34 : vector<16x32xf32>
    %cst_11 = arith.constant dense<0.000000e+00> : vector<16xf32>
    %36 = vector.multi_reduction <add>, %35, %cst_11 [1] : vector<16x32xf32> to vector<16xf32>
    %37 = vector.shape_cast %36 : vector<16xf32> to vector<16x1xf32>
    %cst_12 = arith.constant 3.200000e+01 : f32
    %38 = vector.broadcast %cst_12 : f32 to vector<16x1xf32>
    %39 = arith.divf %37, %38 : vector<16x1xf32>
    %cst_13 = arith.constant 9.99999974E-6 : f32
    %40 = vector.broadcast %cst_13 : f32 to vector<16x1xf32>
    %41 = arith.addf %39, %40 : vector<16x1xf32>
    %42 = math.rsqrt %41 : vector<16x1xf32>
    %43 = vector.broadcast %42 : vector<16x1xf32> to vector<16x32xf32>
    %44 = arith.mulf %34, %43 : vector<16x32xf32>
    %45 = vector.broadcast %5 : vector<1x32xf32> to vector<16x32xf32>
    %46 = arith.mulf %44, %45 : vector<16x32xf32>
    %47 = vector.broadcast %6 : vector<1x32xf32> to vector<16x32xf32>
    %48 = arith.addf %46, %47 : vector<16x32xf32>
    %49 = vector.broadcast %7 : vector<1x32xf32> to vector<16x32xf32>
    %50 = arith.mulf %49, %48 : vector<16x32xf32>
    %51 = arith.addf %28, %50 : vector<16x32xf32>
    %c0_14 = arith.constant 0 : index
    %c0_15 = arith.constant 0 : index
    %52 = vector.load %arg4[%c0_14, %c0_15] : memref<16x32xf32, #tpu.memory_space<vmem>>, vector<16x32xf32>
    tpu.vector_store %arg4[%c0_14, %c0_15], %51 {strides = array<i32>} : memref<16x32xf32, #tpu.memory_space<vmem>>, vector<16x32xf32>,
    %53 = vector.broadcast %8 : vector<1x32xf32> to vector<16x32xf32>
    %54 = arith.mulf %53, %28 : vector<16x32xf32>
    %55 = arith.addf %48, %54 : vector<16x32xf32>
    %c0_16 = arith.constant 0 : index
    %c0_17 = arith.constant 0 : index
    %56 = vector.load %arg5[%c0_16, %c0_17] : memref<16x32xf32, #tpu.memory_space<vmem>>, vector<16x32xf32>
    tpu.vector_store %arg5[%c0_16, %c0_17], %55 {strides = array<i32>} : memref<16x32xf32, #tpu.memory_space<vmem>>, vector<16x32xf32>,
    return
  }
  func.func @transform_0(%arg0: i32) -> (i32, i32) {
    %c0_i32 = arith.constant 0 : i32
    %c0_i32_0 = arith.constant 0 : i32
    return %arg0, %c0_i32 : i32, i32
  }
  func.func @transform_1(%arg0: i32) -> (i32, i32) {
    %c0_i32 = arith.constant 0 : i32
    %c0_i32_0 = arith.constant 0 : i32
    return %arg0, %c0_i32 : i32, i32
  }
  func.func @transform_2(%arg0: i32) -> (i32, i32) {
    %c0_i32 = arith.constant 0 : i32
    %c0_i32_0 = arith.constant 0 : i32
    %c0_i32_1 = arith.constant 0 : i32
    return %c0_i32, %c0_i32_0 : i32, i32
  }
  func.func @transform_3(%arg0: i32) -> (i32, i32) {
    %c0_i32 = arith.constant 0 : i32
    %c0_i32_0 = arith.constant 0 : i32
    return %arg0, %c0_i32 : i32, i32
  }
  func.func @transform_4(%arg0: i32) -> (i32, i32) {
    %c0_i32 = arith.constant 0 : i32
    %c0_i32_0 = arith.constant 0 : i32
    return %arg0, %c0_i32 : i32, i32
  }
}

</mosaic_0001>

<llo_original>
// kernel: tpu_custom_call.1
$region0: #{tpu_custom_call.1}
  #allocation0 [shape = 'u32[]', space=smem, size = 0x4, offset = 0x4, fixed_abs, tag = 'smem constant byte address 0x4 - core index']
  #allocation1 [shape = 'u32[144,128]{1,0:T(1,128)}', space=vmem, size = 0x12000, scoped, tag = 'internal scratch']
  %s0 = inlined_call_operand.hbm [shape: f32[16,32], index: 0, kind: input, shape index: {}]
  %s1 = inlined_call_operand.hbm [shape: f32[16,32], index: 1, kind: input, shape index: {}]
  %s2 = inlined_call_operand.hbm [shape: f32[8,32], index: 2, kind: input, shape index: {}]
  %s3 = inlined_call_operand.hbm [shape: f32[16,32], index: 3, kind: output, shape index: {0}]
  %s4 = inlined_call_operand.hbm [shape: f32[16,32], index: 4, kind: output, shape index: {1}]
  %5 = xla_tuple %s3, %s4
  %s6 = sld [smem:[#allocation0]]
  $region42: #{tpu_custom_call.1} parent=0
    _
  %s8 = ssub.s32 1, %s6
  %s9 = scalar_select 0, %s8, %s6
  $region1: #{tpu_custom_call.1} parent=0
    #allocation2 [shape = 'u8[8192]{0}', space=vmem, size = 0x2000, scoped, tag = 'input window, operand 0, single buffered']
    #allocation3 [shape = 's32[1]{0}', space=sflag, size = 0x4, scoped, tag = 'scoped memory for tpu_custom_call.1']
    #allocation4 [shape = 's32[1]{0}', space=sflag, size = 0x4, scoped, tag = 'scoped memory for tpu_custom_call.1']
    #allocation5 [shape = 'u8[8192]{0}', space=vmem, size = 0x2000, scoped, tag = 'input window, operand 1, single buffered']
    #allocation6 [shape = 's32[1]{0}', space=sflag, size = 0x4, scoped, tag = 'scoped memory for tpu_custom_call.1']
    #allocation7 [shape = 'u8[4096]{0}', space=vmem, size = 0x1000, scoped, tag = 'input window, operand 2, single buffered']
    #allocation8 [shape = 'u8[8192]{0}', space=vmem, size = 0x2000, scoped, tag = 'output window, operand 0, single buffered']
    #allocation9 [shape = 'u8[8192]{0}', space=vmem, size = 0x2000, scoped, tag = 'output window, operand 1, single buffered']
    #allocation10 [shape = 's32[1]{0}', space=sflag, size = 0x4, scoped, tag = 'scoped memory for tpu_custom_call.1']
    %10 = vsyncpa [#allocation3], 0
    %11 = vsyncpa [#allocation6], 0
    %12 = vsyncpa [#allocation4], 0
    %13 = vsyncpa [#allocation10], 0
    // Predicated region
    $region2: #{tpu_custom_call.1} parent=1 // pred_check
      _
    $region3: #{tpu_custom_call.1} parent=1 // pred_check_branch
      %15 = sbr.rel (0) target = $region5
    $region4: #{tpu_custom_call.1} parent=1 // pred_region
      %s17 = ssub.s32 256, 256
      %18 = vsyncadd [#allocation3], %s17
      %s19 = sshll.u32 [#allocation2], 4
      %s20 = int_to_ptr.vmem [resolvable:$true] %s19
      %25 = dma.hbm_to_vmem [thread:$0]  %s0, 256, %s20, [#allocation3], 128, 128, 8
    $region5: #{tpu_custom_call.1} parent=1 // pred_fallthru
      _
    // Predicated region
    $region6: #{tpu_custom_call.1} parent=1 // pred_check
      _
    $region7: #{tpu_custom_call.1} parent=1 // pred_check_branch
      %27 = sbr.rel (0) target = $region9
    $region8: #{tpu_custom_call.1} parent=1 // pred_region
      %s29 = ssub.s32 256, 256
      %30 = vsyncadd [#allocation6], %s29
      %s31 = sshll.u32 [#allocation5], 4
      %s32 = int_to_ptr.vmem [resolvable:$true] %s31
      %37 = dma.hbm_to_vmem [thread:$0]  %s1, 256, %s32, [#allocation6], 128, 128, 8
    $region9: #{tpu_custom_call.1} parent=1 // pred_fallthru
      _
    // Predicated region
    $region10: #{tpu_custom_call.1} parent=1 // pred_check
      _
    $region11: #{tpu_custom_call.1} parent=1 // pred_check_branch
      %39 = sbr.rel (0) target = $region13
    $region12: #{tpu_custom_call.1} parent=1 // pred_region
      %s41 = ssub.s32 128, 128
      %42 = vsyncadd [#allocation6], %s41
      %s44 = sshll.u32 [#allocation7], 4
      %s45 = int_to_ptr.vmem [resolvable:$true] %s44
      %47 = dma.hbm_to_vmem [thread:$0]  %s2, 128, %s45, [#allocation6]
    $region13: #{tpu_custom_call.1} parent=1 // pred_fallthru
      _
    // Predicated region
    $region14: #{tpu_custom_call.1} parent=1 // pred_check
      _
    $region15: #{tpu_custom_call.1} parent=1 // pred_check_branch
      %49 = sbr.rel (0) target = $region17
    $region16: #{tpu_custom_call.1} parent=1 // pred_region
      %50 = dma.done [#allocation3], 256
    $region17: #{tpu_custom_call.1} parent=1 // pred_fallthru
      _
    // Predicated region
    $region18: #{tpu_custom_call.1} parent=1 // pred_check
      _
    $region19: #{tpu_custom_call.1} parent=1 // pred_check_branch
      %52 = sbr.rel (0) target = $region21
    $region20: #{tpu_custom_call.1} parent=1 // pred_region
      %53 = dma.done [#allocation6], 256
    $region21: #{tpu_custom_call.1} parent=1 // pred_fallthru
      _
    // Predicated region
    $region22: #{tpu_custom_call.1} parent=1 // pred_check
      _
    $region23: #{tpu_custom_call.1} parent=1 // pred_check_branch
      %55 = sbr.rel (0) target = $region25
    $region24: #{tpu_custom_call.1} parent=1 // pred_region
      %56 = dma.done [#allocation6], 128
    $region25: #{tpu_custom_call.1} parent=1 // pred_fallthru
      _
    %v57 = vld [vmem:[#allocation2] sm:$0xff]
    %v58 = vld [vmem:[#allocation2 + $0x8] sm:$0xff]
    %v59 = vld [vmem:[#allocation5] sm:$0xff]
    %v60 = vld [vmem:[#allocation5 + $0x8] sm:$0xff]
    %v61 = vld [vmem:[#allocation7] sm:$0xff]
    %vm62 = vcmask 261120
    %v63 = vsel %vm62, %v57, 0.0
    %64 = vadd.xlane.f32.xlu0 %v63
    %v65 = vpop.xlane.xlu0 %64
    %v66 = vsel %vm62, %v58, 0.0
    %67 = vadd.xlane.f32.xlu0 %v66
    %v68 = vpop.xlane.xlu0 %67
    %v69 = vrcp.pop 32.0
    %v70 = vmul.f32 %v65, %v69
    %v71 = vmul.f32 %v68, %v69
    %v72 = vsub.f32 %v57, %v70
    %v73 = vsub.f32 %v58, %v71
    %v74 = vmul.f32 %v72, %v72
    %v75 = vmul.f32 %v73, %v73
    %v76 = vsel %vm62, %v74, 0.0
    %77 = vadd.xlane.f32.xlu0 %v76
    %v78 = vpop.xlane.xlu0 %77
    %v79 = vsel %vm62, %v75, 0.0
    %80 = vadd.xlane.f32.xlu0 %v79
    %v81 = vpop.xlane.xlu0 %80
    %v82 = vmul.f32 %v78, %v69
    %v83 = vmul.f32 %v81, %v69
    %v84 = vadd.f32 %v82, 1e-05
    %v85 = vadd.f32 %v83, 1e-05
    %v86 = vrsqrt.pop %v84
    %v87 = vrsqrt.pop %v85
    %v88 = vmul.f32 %v72, %v86
    %v89 = vmul.f32 %v73, %v87
    %v90 = vlaneseq
    %v91 = vshrl.u32 %v90, 7
    %v92 = vsub.s32 0, %v91
    %v93 = vrot.slane %v61, %v92
    %v94 = vmul.f32 %v88, %v93
    %v95 = vmul.f32 %v89, %v93
    %v96 = vlaneseq
    %v97 = vshrl.u32 %v96, 7
    %v98 = vsub.s32 1, %v97
    %v99 = vrot.slane %v61, %v98
    %v100 = vadd.f32 %v94, %v99
    %v101 = vadd.f32 %v95, %v99
    %v102 = vsel %vm62, %v59, 0.0
    %103 = vadd.xlane.f32.xlu0 %v102
    %v104 = vpop.xlane.xlu0 %103
    %v105 = vsel %vm62, %v60, 0.0
    %106 = vadd.xlane.f32.xlu0 %v105
    %v107 = vpop.xlane.xlu0 %106
    %v108 = vmul.f32 %v104, %v69
    %v109 = vmul.f32 %v107, %v69
    %v110 = vsub.f32 %v59, %v108
    %v111 = vsub.f32 %v60, %v109
    %v112 = vmul.f32 %v110, %v110
    %v113 = vmul.f32 %v111, %v111
    %v114 = vsel %vm62, %v112, 0.0
    %115 = vadd.xlane.f32.xlu0 %v114
    %v116 = vpop.xlane.xlu0 %115
    %v117 = vsel %vm62, %v113, 0.0
    %118 = vadd.xlane.f32.xlu0 %v117
    %v119 = vpop.xlane.xlu0 %118
    %v120 = vmul.f32 %v116, %v69
    %v121 = vmul.f32 %v119, %v69
    %v122 = vadd.f32 %v120, 1e-05
    %v123 = vadd.f32 %v121, 1e-05
    %v124 = vrsqrt.pop %v122
    %v125 = vrsqrt.pop %v123
    %v126 = vmul.f32 %v110, %v124
    %v127 = vmul.f32 %v111, %v125
    %v128 = vlaneseq
    %v129 = vshrl.u32 %v128, 7
    %v130 = vsub.s32 2, %v129
    %v131 = vrot.slane %v61, %v130
    %v132 = vmul.f32 %v126, %v131
    %v133 = vmul.f32 %v127, %v131
    %v134 = vlaneseq
    %v135 = vshrl.u32 %v134, 7
    %v136 = vsub.s32 3, %v135
    %v137 = vrot.slane %v61, %v136
    %v138 = vadd.f32 %v132, %v137
    %v139 = vadd.f32 %v133, %v137
    %v140 = vlaneseq
    %v141 = vshrl.u32 %v140, 7
    %v142 = vsub.s32 4, %v141
    %v143 = vrot.slane %v61, %v142
    %v144 = vmul.f32 %v143, %v138
    %v145 = vmul.f32 %v143, %v139
    %v146 = vadd.f32 %v100, %v144
    %v147 = vadd.f32 %v101, %v145
    %148 = vst.msk [vmem:[#allocation8] sm:$0xff] %vm62, %v146
    %149 = vst.msk [vmem:[#allocation8 + $0x8] sm:$0xff] %vm62, %v147
    %v150 = vlaneseq
    %v151 = vshrl.u32 %v150, 7
    %v152 = vsub.s32 5, %v151
    %v153 = vrot.slane %v61, %v152
    %v154 = vmul.f32 %v153, %v100
    %v155 = vmul.f32 %v153, %v101
    %v156 = vadd.f32 %v138, %v154
    %v157 = vadd.f32 %v139, %v155
    %158 = vst.msk [vmem:[#allocation9] sm:$0xff] %vm62, %v156
    %159 = vst.msk [vmem:[#allocation9 + $0x8] sm:$0xff] %vm62, %v157
    // Predicated region
    $region26: #{tpu_custom_call.1} parent=1 // pred_check
      _
    $region27: #{tpu_custom_call.1} parent=1 // pred_check_branch
      %161 = sbr.rel (0) target = $region29
    $region28: #{tpu_custom_call.1} parent=1 // pred_region
      %s163 = ssub.s32 256, 256
      %164 = vsyncadd [#allocation4], %s163
      %s165 = sshll.u32 [#allocation8], 4
      %s166 = int_to_ptr.vmem [resolvable:$true] %s165
      %171 = dma.vmem_to_hbm [thread:$0]  %s166, 256, %s3, [#allocation4], 128, 128, 8
    $region29: #{tpu_custom_call.1} parent=1 // pred_fallthru
      _
    // Predicated region
    $region30: #{tpu_custom_call.1} parent=1 // pred_check
      _
    $region31: #{tpu_custom_call.1} parent=1 // pred_check_branch
      %173 = sbr.rel (0) target = $region33
    $region32: #{tpu_custom_call.1} parent=1 // pred_region
      %s175 = ssub.s32 256, 256
      %176 = vsyncadd [#allocation10], %s175
      %s177 = sshll.u32 [#allocation9], 4
      %s178 = int_to_ptr.vmem [resolvable:$true] %s177
      %183 = dma.vmem_to_hbm [thread:$0]  %s178, 256, %s4, [#allocation10], 128, 128, 8
    $region33: #{tpu_custom_call.1} parent=1 // pred_fallthru
      _
    // Predicated region
    $region34: #{tpu_custom_call.1} parent=1 // pred_check
      _
    $region35: #{tpu_custom_call.1} parent=1 // pred_check_branch
      %185 = sbr.rel (0) target = $region37
    $region36: #{tpu_custom_call.1} parent=1 // pred_region
      %186 = dma.done [#allocation4], 256
    $region37: #{tpu_custom_call.1} parent=1 // pred_fallthru
      _
    // Predicated region
    $region38: #{tpu_custom_call.1} parent=1 // pred_check
      _
    $region39: #{tpu_custom_call.1} parent=1 // pred_check_branch
      %188 = sbr.rel (0) target = $region41
    $region40: #{tpu_custom_call.1} parent=1 // pred_region
      %189 = dma.done [#allocation10], 256
    $region41: #{tpu_custom_call.1} parent=1 // pred_fallthru
      _
    %190 = vsyncpa [#allocation3], 1
    %191 = vsyncpa [#allocation6], 1
    %192 = vsyncpa [#allocation4], 1
    %193 = vsyncpa [#allocation10], 1

</llo_original>
